<compile_context>
chip_gen: v5e
topology: v5e:2x2
jax: 0.10.0
libtpu: 0.0.40
codegen_flags: <defaults>
</compile_context>

<pallas_src>
import functools

import jax
import jax.numpy as jnp
from jax.experimental import pallas as pl
from jax.experimental.pallas import tpu as pltpu


# ------------------------------ kernel body ---------------------------------

def _fused_upsample_kernel(a1_ref, w1_ref, bt_ref, ypad_ref, mask_ref,
                           w2_ref, g_ref, b_ref, o_ref, zw_ref, p_ref,
                           *, pitch, n_valid, eps):
    """Whole Upsample_block forward in one invocation.

    Every GEMM uses the flat output raster m = n*256 + i*16 + j (512 lanes,
    450 valid) as its lane axis.  Dead columns (i==15 or j==15) are zeroed and
    serve as the zero padding of the 3x3 conv, which makes each of its 9 taps
    a constant lane shift of a single (2*Cout, 512) slab.

    a1_ref  : (64, 512)  transposed-conv im2col slab (zero-inserted input)
    w1_ref  : (8, 64)    transposed-conv weights, rows Cout:2*Cout are zero
    bt_ref  : (8, 1)     transposed-conv bias   (rows Cout:2*Cout zero)
    ypad_ref: (8, 512)   y in raster layout, occupying rows Cout:2*Cout
    mask_ref: (1, 512)   1.0 at the 450 valid positions, 0.0 at dead columns
    w2_ref  : (4, 72)    3x3 conv weights, K = (tap-major, channel-minor)
    g/b_ref : (4, 1)     BN gamma / beta
    o_ref   : (4, 512)   lane-dense output (dead columns = don't-care)
    zw_ref  : (8, 768)   VMEM scratch: zero-extended z for the tap windows
    p_ref   : (72, 512)  VMEM scratch: im2col patches of the 3x3 conv
    """
    m = o_ref.shape[1]                       # 512
    pad = (zw_ref.shape[1] - m) // 2         # 128
    zc = zw_ref.shape[0]                     # 2*Cout = 8
    mask = mask_ref[...]                     # (1, 512)

    # ---- ConvTranspose2d(k=4, s=2, p=1) as ONE GEMM in raster layout --------
    u = jnp.dot(w1_ref[...], a1_ref[...],
                preferred_element_type=jnp.float32)          # (8, 512)
    # +bias, then zero columns i==15 / j==15: this *is* the nearest 16->15
    # resize (identity slice) and the conv's zero padding at the same time.
    u = (u + bt_ref[...]) * mask
    z = u + ypad_ref[...]            # torch.cat((x_up, y), 1): y sits in rows 4:8

    # ---- zero-extend z so every 3x3 tap is a static lane window -------------
    zw_ref[...] = jnp.zeros_like(zw_ref)
    zw_ref[:, pad:pad + m] = z

    # ---- im2col for the 3x3 conv: 9 lane-shifted windows -> (72, 512) -------
    t = 0
    for dh in range(3):
        for dw in range(3):
            s = (dh - 1) * pitch + (dw - 1)
            p_ref[t * zc:(t + 1) * zc, :] = zw_ref[:, pad + s:pad + s + m]
            t += 1

    # ---- Conv2d(3x3, p=1) GEMM + train-mode BatchNorm + ReLU ----------------
    # (conv bias omitted on purpose: cancelled exactly by the BN mean subtract)
    acc = jnp.dot(w2_ref[...], p_ref[...],
                  preferred_element_type=jnp.float32)        # (4, 512)
    acc = acc * mask                 # zero dead columns so BN stats are exact
    inv_n = 1.0 / n_valid
    mean = jnp.sum(acc, axis=1, keepdims=True) * inv_n
    ex2 = jnp.sum(acc * acc, axis=1, keepdims=True) * inv_n
    var = ex2 - mean * mean          # one-pass biased variance (torch train mode)
    out = (acc - mean) * jax.lax.rsqrt(var + eps) * g_ref[...] + b_ref[...]
    o_ref[...] = jnp.maximum(out, 0.0).astype(o_ref.dtype)


# ------------------------------ host wrapper --------------------------------

def upsample_block_forward(params, x, y, eps=1e-5):
    n, cin, h, w = x.shape
    cout = params["wt"].shape[1]
    h2, w2 = 2 * h, 2 * w                    # transposed-conv output (16, 16)
    assert (h2, w2) == (16, 16) and y.shape == (n, cout, 15, 15), (
        "fused kernel is specialised to the 8x8 -> 16x16 -> 15x15 path of the "
        "module (the F.interpolate branch)")
    hc = 15                                  # nearest 16->15 == drop row/col 15
    pitch = w2                               # raster row pitch (16)
    m = n * h2 * pitch                       # 512 lanes (4 * 128, unmasked vst)
    n_valid = n * hc * hc                    # 450 positions feeding BN stats
    f32 = jnp.float32

    # --- transposed conv == correlation over the zero-inserted, padded input --
    x_dil = jax.lax.pad(x.astype(f32), jnp.float32(0),
                        ((0, 0, 0), (0, 0, 0), (0, 0, 1), (0, 0, 1)))   # (n,cin,15,15)
    x_pad = jnp.pad(x_dil, ((0, 0), (0, 0), (2, 2), (2, 2)))            # (n,cin,19,19)
    taps = [x_pad[:, :, kh:kh + h2, kw:kw + w2]
            for kh in range(4) for kw in range(4)]
    a1 = jnp.transpose(jnp.stack(taps), (0, 2, 1, 3, 4)).reshape(16 * cin, m)

    wflip = params["wt"].astype(f32)[:, :, ::-1, ::-1]                  # (cin,cout,4,4)
    w1 = jnp.transpose(wflip, (2, 3, 0, 1)).reshape(16 * cin, cout).T   # (cout, 64)
    w1 = jnp.concatenate([w1, jnp.zeros((cout, 16 * cin), f32)], axis=0)
    bt8 = jnp.concatenate([params["bt"].astype(f32), jnp.zeros((cout,), f32)])
    bt8 = bt8.reshape(2 * cout, 1)

    # --- y in the same raster layout, occupying channel rows cout:2*cout ------
    yflat = jnp.pad(y.astype(f32), ((0, 0), (0, 0), (0, 1), (0, 1)))    # (n,cout,16,16)
    yflat = jnp.transpose(yflat, (1, 0, 2, 3)).reshape(cout, m)
    ypad = jnp.concatenate([jnp.zeros((cout, m), f32), yflat], axis=0)

    # --- validity mask: drops row/col 15 of each 16x16 image ------------------
    ok = jnp.arange(pitch) < hc
    mask = jnp.tile((ok[:, None] & ok[None, :]).reshape(-1), (n,))
    mask = mask.reshape(1, m).astype(f32)

    w2m = jnp.transpose(params["wc"].astype(f32), (0, 2, 3, 1)).reshape(
        cout, 2 * cout * 9)
    gamma = params["gamma"].reshape(cout, 1).astype(f32)
    beta = params["beta"].reshape(cout, 1).astype(f32)
    # NOTE: params["bc"] is intentionally not used (cancelled by BN mean
    # subtraction in training mode).

    kernel = functools.partial(_fused_upsample_kernel, pitch=pitch,
                               n_valid=n_valid, eps=eps)
    out = pl.pallas_call(
        kernel,
        out_shape=jax.ShapeDtypeStruct((cout, m), f32),
        grid=(1,),
        in_specs=[
            pl.BlockSpec((16 * cin, m), lambda i: (0, 0)),
            pl.BlockSpec((2 * cout, 16 * cin), lambda i: (0, 0)),
            pl.BlockSpec((2 * cout, 1), lambda i: (0, 0)),
            pl.BlockSpec((2 * cout, m), lambda i: (0, 0)),
            pl.BlockSpec((1, m), lambda i: (0, 0)),
            pl.BlockSpec((cout, 2 * cout * 9), lambda i: (0, 0)),
            pl.BlockSpec((cout, 1), lambda i: (0, 0)),
            pl.BlockSpec((cout, 1), lambda i: (0, 0)),
        ],
        out_specs=pl.BlockSpec((cout, m), lambda i: (0, 0)),
        scratch_shapes=[
            pltpu.VMEM((2 * cout, m + 256), f32),     # zero-extended z
            pltpu.VMEM((2 * cout * 9, m), f32),       # 3x3-conv im2col patches
        ],
        compiler_params=pltpu.CompilerParams(
            dimension_semantics=("arbitrary",)),
    )(a1, w1, bt8, ypad, mask, w2m, gamma, beta)

    # (Cout, n*16*16) raster -> NCHW, drop the dead row/col 15 (16->15 resize).
    out = out.reshape(cout, n, h2, pitch)
    # TODO(synk): BatchNorm running_mean/running_var buffer updates (training
    # side-effect) are not materialized; only the forward activation is produced.
    return jnp.transpose(out, (1, 0, 2, 3))[:, :, :hc, :hc]


# ------------------- pure-JAX reference (XLA convs) check -------------------

def _ref_forward(params, x, y):
    dnums = ("NCHW", "OIHW", "NCHW")
    wt_conv = params["wt"].transpose(1, 0, 2, 3)[:, :, ::-1, ::-1]
    xt = jax.lax.conv_general_dilated(
        x, wt_conv, window_strides=(1, 1), padding=[(2, 2), (2, 2)],
        lhs_dilation=(2, 2), dimension_numbers=dnums)
    xt = xt + params["bt"][None, :, None, None]
    h = xt.shape[2]
    if h == 16:
        idx = (jnp.arange(15) * h) // 15
        xt = xt[:, :, idx, :][:, :, :, idx]
    xi = jnp.concatenate([xt, y], axis=1)
    xc = jax.lax.conv_general_dilated(
        xi, params["wc"], (1, 1), [(1, 1), (1, 1)], dimension_numbers=dnums)
    xc = xc + params["bc"][None, :, None, None]
    mean = xc.mean(axis=(0, 2, 3), keepdims=True)
    var = xc.var(axis=(0, 2, 3), keepdims=True)
    xn = (xc - mean) * jax.lax.rsqrt(var + 1e-5)
    xn = xn * params["gamma"][None, :, None, None] + params["beta"][None, :, None, None]
    return jnp.maximum(xn, 0.0)


if __name__ == "__main__":
    in_channels, out_channels = 4, 4
    key = jax.random.PRNGKey(0)
    ks = jax.random.split(key, 8)
    # transconv(x: 8x8) -> 16x16 -> nearest 15x15 -> concat with y (15x15)
    x = jax.random.normal(ks[0], (2, in_channels, 8, 8), jnp.float32)
    y = jax.random.normal(ks[1], (2, out_channels, 15, 15), jnp.float32)
    params = {
        "wt": 0.1 * jax.random.normal(ks[2], (in_channels, out_channels, 4, 4), jnp.float32),
        "bt": 0.1 * jax.random.normal(ks[3], (out_channels,), jnp.float32),
        "wc": 0.1 * jax.random.normal(ks[4], (out_channels, 2 * out_channels, 3, 3), jnp.float32),
        "bc": 0.1 * jax.random.normal(ks[5], (out_channels,), jnp.float32),
        "gamma": 1.0 + 0.1 * jax.random.normal(ks[6], (out_channels,), jnp.float32),
        "beta": 0.1 * jax.random.normal(ks[7], (out_channels,), jnp.float32),
    }

    out = jax.jit(upsample_block_forward)(params, x, y)
    out = jax.block_until_ready(out)
    assert out.shape == (2, out_channels, 15, 15), out.shape

    ref = jax.block_until_ready(_ref_forward(params, x, y))
    assert jnp.allclose(out, ref, atol=1e-3, rtol=1e-3), float(jnp.max(jnp.abs(out - ref)))

    print("KERNEL_OK")
</pallas_src>

<mosaic_0001>
module attributes {stable_mosaic.version = 11 : i64} {
  func.func @_fused_upsample_kernel(%arg0: i32, %arg1: memref<64x512xf32, #tpu.memory_space<vmem>>, %arg2: memref<8x64xf32, #tpu.memory_space<vmem>>, %arg3: memref<8x1xf32, #tpu.memory_space<vmem>>, %arg4: memref<8x512xf32, #tpu.memory_space<vmem>>, %arg5: memref<1x512xf32, #tpu.memory_space<vmem>>, %arg6: memref<4x72xf32, #tpu.memory_space<vmem>>, %arg7: memref<4x1xf32, #tpu.memory_space<vmem>>, %arg8: memref<4x1xf32, #tpu.memory_space<vmem>>, %arg9: memref<4x512xf32, #tpu.memory_space<vmem>>, %arg10: memref<8x768xf32, #tpu.memory_space<vmem>>, %arg11: memref<72x512xf32, #tpu.memory_space<vmem>>) attributes {dimension_semantics = [#tpu.dimension_semantics<arbitrary>], iteration_bounds = array<i64: 1>, scalar_prefetch = 0 : i64, scratch_operands = 2 : i64, tpu.core_type = #tpu.core_type<tc>, window_params = [{pipeline_mode = #tpu.pipeline_mode<synchronous>, transform_indices = @transform_0, window_bounds = array<i64: 64, 512>}, {pipeline_mode = #tpu.pipeline_mode<synchronous>, transform_indices = @transform_1, window_bounds = array<i64: 8, 64>}, {pipeline_mode = #tpu.pipeline_mode<synchronous>, transform_indices = @transform_2, window_bounds = array<i64: 8, 1>}, {pipeline_mode = #tpu.pipeline_mode<synchronous>, transform_indices = @transform_3, window_bounds = array<i64: 8, 512>}, {pipeline_mode = #tpu.pipeline_mode<synchronous>, transform_indices = @transform_4, window_bounds = array<i64: 1, 512>}, {pipeline_mode = #tpu.pipeline_mode<synchronous>, transform_indices = @transform_5, window_bounds = array<i64: 4, 72>}, {pipeline_mode = #tpu.pipeline_mode<synchronous>, transform_indices = @transform_6, window_bounds = array<i64: 4, 1>}, {pipeline_mode = #tpu.pipeline_mode<synchronous>, transform_indices = @transform_7, window_bounds = array<i64: 4, 1>}, {pipeline_mode = #tpu.pipeline_mode<synchronous>, transform_indices = @transform_8, window_bounds = array<i64: 4, 512>}]} {
    %c0 = arith.constant 0 : index
    %c0_0 = arith.constant 0 : index
    %0 = vector.load %arg5[%c0, %c0_0] : memref<1x512xf32, #tpu.memory_space<vmem>>, vector<1x512xf32>
    %c0_1 = arith.constant 0 : index
    %c0_2 = arith.constant 0 : index
    %1 = vector.load %arg2[%c0_1, %c0_2] : memref<8x64xf32, #tpu.memory_space<vmem>>, vector<8x64xf32>
    %c0_3 = arith.constant 0 : index
    %c0_4 = arith.constant 0 : index
    %2 = vector.load %arg1[%c0_3, %c0_4] : memref<64x512xf32, #tpu.memory_space<vmem>>, vector<64x512xf32>
    %cst = arith.constant dense<0.000000e+00> : vector<8x512xf32>
    %3 = tpu.matmul %1, %2, %cst {dimension_numbers = #tpu.dot_dimension_numbers<[1], [0], [0], [1], [0, 0, 1, 1], [], []>} : vector<8x64xf32>, vector<64x512xf32>, vector<8x512xf32> -> vector<8x512xf32>
    %c0_5 = arith.constant 0 : index
    %c0_6 = arith.constant 0 : index
    %4 = vector.load %arg3[%c0_5, %c0_6] : memref<8x1xf32, #tpu.memory_space<vmem>>, vector<8x1xf32>
    %5 = vector.broadcast %4 : vector<8x1xf32> to vector<8x512xf32>
    %6 = arith.addf %3, %5 : vector<8x512xf32>
    %7 = vector.broadcast %0 : vector<1x512xf32> to vector<8x512xf32>
    %8 = arith.mulf %6, %7 : vector<8x512xf32>
    %c0_7 = arith.constant 0 : index
    %c0_8 = arith.constant 0 : index
    %9 = vector.load %arg4[%c0_7, %c0_8] : memref<8x512xf32, #tpu.memory_space<vmem>>, vector<8x512xf32>
    %10 = arith.addf %8, %9 : vector<8x512xf32>
    %cst_9 = arith.constant 0.000000e+00 : f32
    %11 = vector.broadcast %cst_9 : f32 to vector<8x768xf32>
    %c0_10 = arith.constant 0 : index
    %c0_11 = arith.constant 0 : index
    %12 = vector.load %arg10[%c0_10, %c0_11] : memref<8x768xf32, #tpu.memory_space<vmem>>, vector<8x768xf32>
    tpu.vector_store %arg10[%c0_10, %c0_11], %11 {strides = array<i32>} : memref<8x768xf32, #tpu.memory_space<vmem>>, vector<8x768xf32>,
    %c0_12 = arith.constant 0 : index
    %c128 = arith.constant 128 : index
    %13 = vector.load %arg10[%c0_12, %c128] : memref<8x768xf32, #tpu.memory_space<vmem>>, vector<8x512xf32>
    tpu.vector_store %arg10[%c0_12, %c128], %10 {strides = array<i32>} : memref<8x768xf32, #tpu.memory_space<vmem>>, vector<8x512xf32>,
    %c0_13 = arith.constant 0 : index
    %c111 = arith.constant 111 : index
    %14 = vector.load %arg10[%c0_13, %c111] : memref<8x768xf32, #tpu.memory_space<vmem>>, vector<8x512xf32>
    %c0_14 = arith.constant 0 : index
    %c0_15 = arith.constant 0 : index
    %15 = vector.load %arg11[%c0_14, %c0_15] : memref<72x512xf32, #tpu.memory_space<vmem>>, vector<8x512xf32>
    tpu.vector_store %arg11[%c0_14, %c0_15], %14 {strides = array<i32>} : memref<72x512xf32, #tpu.memory_space<vmem>>, vector<8x512xf32>,
    %c0_16 = arith.constant 0 : index
    %c112 = arith.constant 112 : index
    %16 = vector.load %arg10[%c0_16, %c112] : memref<8x768xf32, #tpu.memory_space<vmem>>, vector<8x512xf32>
    %c8 = arith.constant 8 : index
    %c0_17 = arith.constant 0 : index
    %17 = vector.load %arg11[%c8, %c0_17] : memref<72x512xf32, #tpu.memory_space<vmem>>, vector<8x512xf32>
    tpu.vector_store %arg11[%c8, %c0_17], %16 {strides = array<i32>} : memref<72x512xf32, #tpu.memory_space<vmem>>, vector<8x512xf32>,
    %c0_18 = arith.constant 0 : index
    %c113 = arith.constant 113 : index
    %18 = vector.load %arg10[%c0_18, %c113] : memref<8x768xf32, #tpu.memory_space<vmem>>, vector<8x512xf32>
    %c16 = arith.constant 16 : index
    %c0_19 = arith.constant 0 : index
    %19 = vector.load %arg11[%c16, %c0_19] : memref<72x512xf32, #tpu.memory_space<vmem>>, vector<8x512xf32>
    tpu.vector_store %arg11[%c16, %c0_19], %18 {strides = array<i32>} : memref<72x512xf32, #tpu.memory_space<vmem>>, vector<8x512xf32>,
    %c0_20 = arith.constant 0 : index
    %c127 = arith.constant 127 : index
    %20 = vector.load %arg10[%c0_20, %c127] : memref<8x768xf32, #tpu.memory_space<vmem>>, vector<8x512xf32>
    %c24 = arith.constant 24 : index
    %c0_21 = arith.constant 0 : index
    %21 = vector.load %arg11[%c24, %c0_21] : memref<72x512xf32, #tpu.memory_space<vmem>>, vector<8x512xf32>
    tpu.vector_store %arg11[%c24, %c0_21], %20 {strides = array<i32>} : memref<72x512xf32, #tpu.memory_space<vmem>>, vector<8x512xf32>,
    %c0_22 = arith.constant 0 : index
    %c128_23 = arith.constant 128 : index
    %22 = vector.load %arg10[%c0_22, %c128_23] : memref<8x768xf32, #tpu.memory_space<vmem>>, vector<8x512xf32>
    %c32 = arith.constant 32 : index
    %c0_24 = arith.constant 0 : index
    %23 = vector.load %arg11[%c32, %c0_24] : memref<72x512xf32, #tpu.memory_space<vmem>>, vector<8x512xf32>
    tpu.vector_store %arg11[%c32, %c0_24], %22 {strides = array<i32>} : memref<72x512xf32, #tpu.memory_space<vmem>>, vector<8x512xf32>,
    %c0_25 = arith.constant 0 : index
    %c129 = arith.constant 129 : index
    %24 = vector.load %arg10[%c0_25, %c129] : memref<8x768xf32, #tpu.memory_space<vmem>>, vector<8x512xf32>
    %c40 = arith.constant 40 : index
    %c0_26 = arith.constant 0 : index
    %25 = vector.load %arg11[%c40, %c0_26] : memref<72x512xf32, #tpu.memory_space<vmem>>, vector<8x512xf32>
    tpu.vector_store %arg11[%c40, %c0_26], %24 {strides = array<i32>} : memref<72x512xf32, #tpu.memory_space<vmem>>, vector<8x512xf32>,
    %c0_27 = arith.constant 0 : index
    %c143 = arith.constant 143 : index
    %26 = vector.load %arg10[%c0_27, %c143] : memref<8x768xf32, #tpu.memory_space<vmem>>, vector<8x512xf32>
    %c48 = arith.constant 48 : index
    %c0_28 = arith.constant 0 : index
    %27 = vector.load %arg11[%c48, %c0_28] : memref<72x512xf32, #tpu.memory_space<vmem>>, vector<8x512xf32>
    tpu.vector_store %arg11[%c48, %c0_28], %26 {strides = array<i32>} : memref<72x512xf32, #tpu.memory_space<vmem>>, vector<8x512xf32>,
    %c0_29 = arith.constant 0 : index
    %c144 = arith.constant 144 : index
    %28 = vector.load %arg10[%c0_29, %c144] : memref<8x768xf32, #tpu.memory_space<vmem>>, vector<8x512xf32>
    %c56 = arith.constant 56 : index
    %c0_30 = arith.constant 0 : index
    %29 = vector.load %arg11[%c56, %c0_30] : memref<72x512xf32, #tpu.memory_space<vmem>>, vector<8x512xf32>
    tpu.vector_store %arg11[%c56, %c0_30], %28 {strides = array<i32>} : memref<72x512xf32, #tpu.memory_space<vmem>>, vector<8x512xf32>,
    %c0_31 = arith.constant 0 : index
    %c145 = arith.constant 145 : index
    %30 = vector.load %arg10[%c0_31, %c145] : memref<8x768xf32, #tpu.memory_space<vmem>>, vector<8x512xf32>
    %c64 = arith.constant 64 : index
    %c0_32 = arith.constant 0 : index
    %31 = vector.load %arg11[%c64, %c0_32] : memref<72x512xf32, #tpu.memory_space<vmem>>, vector<8x512xf32>
    tpu.vector_store %arg11[%c64, %c0_32], %30 {strides = array<i32>} : memref<72x512xf32, #tpu.memory_space<vmem>>, vector<8x512xf32>,
    %c0_33 = arith.constant 0 : index
    %c0_34 = arith.constant 0 : index
    %32 = vector.load %arg6[%c0_33, %c0_34] : memref<4x72xf32, #tpu.memory_space<vmem>>, vector<4x72xf32>
    %c0_35 = arith.constant 0 : index
    %c0_36 = arith.constant 0 : index
    %33 = vector.load %arg11[%c0_35, %c0_36] : memref<72x512xf32, #tpu.memory_space<vmem>>, vector<72x512xf32>
    %cst_37 = arith.constant dense<0.000000e+00> : vector<4x512xf32>
    %34 = tpu.matmul %32, %33, %cst_37 {dimension_numbers = #tpu.dot_dimension_numbers<[1], [0], [0], [1], [0, 0, 1, 1], [], []>} : vector<4x72xf32>, vector<72x512xf32>, vector<4x512xf32> -> vector<4x512xf32>
    %35 = vector.broadcast %0 : vector<1x512xf32> to vector<4x512xf32>
    %36 = arith.mulf %34, %35 : vector<4x512xf32>
    %cst_38 = arith.constant dense<0.000000e+00> : vector<4xf32>
    %37 = vector.multi_reduction <add>, %36, %cst_38 [1] : vector<4x512xf32> to vector<4xf32>
    %38 = vector.shape_cast %37 : vector<4xf32> to vector<4x1xf32>
    %cst_39 = arith.constant 0.00222222228 : f32
    %39 = vector.broadcast %cst_39 : f32 to vector<4x1xf32>
    %40 = arith.mulf %38, %39 : vector<4x1xf32>
    %41 = arith.mulf %36, %36 : vector<4x512xf32>
    %cst_40 = arith.constant dense<0.000000e+00> : vector<4xf32>
    %42 = vector.multi_reduction <add>, %41, %cst_40 [1] : vector<4x512xf32> to vector<4xf32>
    %43 = vector.shape_cast %42 : vector<4xf32> to vector<4x1xf32>
    %cst_41 = arith.constant 0.00222222228 : f32
    %44 = vector.broadcast %cst_41 : f32 to vector<4x1xf32>
    %45 = arith.mulf %43, %44 : vector<4x1xf32>
    %46 = arith.mulf %40, %40 : vector<4x1xf32>
    %47 = arith.subf %45, %46 : vector<4x1xf32>
    %48 = vector.broadcast %40 : vector<4x1xf32> to vector<4x512xf32>
    %49 = arith.subf %36, %48 : vector<4x512xf32>
    %cst_42 = arith.constant 9.99999974E-6 : f32
    %50 = vector.broadcast %cst_42 : f32 to vector<4x1xf32>
    %51 = arith.addf %47, %50 : vector<4x1xf32>
    %52 = math.rsqrt %51 : vector<4x1xf32>
    %53 = vector.broadcast %52 : vector<4x1xf32> to vector<4x512xf32>
    %54 = arith.mulf %49, %53 : vector<4x512xf32>
    %c0_43 = arith.constant 0 : index
    %c0_44 = arith.constant 0 : index
    %55 = vector.load %arg7[%c0_43, %c0_44] : memref<4x1xf32, #tpu.memory_space<vmem>>, vector<4x1xf32>
    %56 = vector.broadcast %55 : vector<4x1xf32> to vector<4x512xf32>
    %57 = arith.mulf %54, %56 : vector<4x512xf32>
    %c0_45 = arith.constant 0 : index
    %c0_46 = arith.constant 0 : index
    %58 = vector.load %arg8[%c0_45, %c0_46] : memref<4x1xf32, #tpu.memory_space<vmem>>, vector<4x1xf32>
    %59 = vector.broadcast %58 : vector<4x1xf32> to vector<4x512xf32>
    %60 = arith.addf %57, %59 : vector<4x512xf32>
    %cst_47 = arith.constant 0.000000e+00 : f32
    %61 = vector.broadcast %cst_47 : f32 to vector<4x512xf32>
    %62 = arith.maximumf %60, %61 : vector<4x512xf32>
    %c0_48 = arith.constant 0 : index
    %c0_49 = arith.constant 0 : index
    %63 = vector.load %arg9[%c0_48, %c0_49] : memref<4x512xf32, #tpu.memory_space<vmem>>, vector<4x512xf32>
    tpu.vector_store %arg9[%c0_48, %c0_49], %62 {strides = array<i32>} : memref<4x512xf32, #tpu.memory_space<vmem>>, vector<4x512xf32>,
    return
  }
  func.func @transform_0(%arg0: i32) -> (i32, i32) {
    %c0_i32 = arith.constant 0 : i32
    %c0_i32_0 = arith.constant 0 : i32
    %c0_i32_1 = arith.constant 0 : i32
    return %c0_i32, %c0_i32_0 : i32, i32
  }
  func.func @transform_1(%arg0: i32) -> (i32, i32) {
    %c0_i32 = arith.constant 0 : i32
    %c0_i32_0 = arith.constant 0 : i32
    %c0_i32_1 = arith.constant 0 : i32
    return %c0_i32, %c0_i32_0 : i32, i32
  }
  func.func @transform_2(%arg0: i32) -> (i32, i32) {
    %c0_i32 = arith.constant 0 : i32
    %c0_i32_0 = arith.constant 0 : i32
    %c0_i32_1 = arith.constant 0 : i32
    return %c0_i32, %c0_i32_0 : i32, i32
  }
  func.func @transform_3(%arg0: i32) -> (i32, i32) {
    %c0_i32 = arith.constant 0 : i32
    %c0_i32_0 = arith.constant 0 : i32
    %c0_i32_1 = arith.constant 0 : i32
    return %c0_i32, %c0_i32_0 : i32, i32
  }
  func.func @transform_4(%arg0: i32) -> (i32, i32) {
    %c0_i32 = arith.constant 0 : i32
    %c0_i32_0 = arith.constant 0 : i32
    %c0_i32_1 = arith.constant 0 : i32
    return %c0_i32, %c0_i32_0 : i32, i32
  }
  func.func @transform_5(%arg0: i32) -> (i32, i32) {
    %c0_i32 = arith.constant 0 : i32
    %c0_i32_0 = arith.constant 0 : i32
    %c0_i32_1 = arith.constant 0 : i32
    return %c0_i32, %c0_i32_0 : i32, i32
  }
  func.func @transform_6(%arg0: i32) -> (i32, i32) {
    %c0_i32 = arith.constant 0 : i32
    %c0_i32_0 = arith.constant 0 : i32
    %c0_i32_1 = arith.constant 0 : i32
    return %c0_i32, %c0_i32_0 : i32, i32
  }
  func.func @transform_7(%arg0: i32) -> (i32, i32) {
    %c0_i32 = arith.constant 0 : i32
    %c0_i32_0 = arith.constant 0 : i32
    %c0_i32_1 = arith.constant 0 : i32
    return %c0_i32, %c0_i32_0 : i32, i32
  }
  func.func @transform_8(%arg0: i32) -> (i32, i32) {
    %c0_i32 = arith.constant 0 : i32
    %c0_i32_0 = arith.constant 0 : i32
    %c0_i32_1 = arith.constant 0 : i32
    return %c0_i32, %c0_i32_0 : i32, i32
  }
}

</mosaic_0001>

<llo_original>
// kernel: upsample_block_forward.1
$region0: #{upsample_block_forward.1}
  #allocation0 [shape = 'u32[]', space=smem, size = 0x4, offset = 0x4, fixed_abs, tag = 'smem constant byte address 0x4 - core index']
  #allocation1 [shape = 'u32[72,128]{1,0:T(1,128)}', space=vmem, size = 0x9000, scoped, tag = 'internal scratch']
  #allocation2 [shape = 'f32[8,768]{1,0:T(8,128)}', space=vmem, size = 0x6000, scoped, tag = 'scratch operand']
  #allocation3 [shape = 'f32[72,512]{1,0:T(8,128)}', space=vmem, size = 0x24000, scoped, tag = 'scratch operand']
  %s0 = inlined_call_operand.vmem [shape: f32[64,512], index: 0, kind: input, shape index: {}]
  %s1 = inlined_call_operand.vmem [shape: f32[8,64], index: 1, kind: input, shape index: {}]
  %s2 = inlined_call_operand.vmem [shape: f32[8,1], index: 2, kind: input, shape index: {}]
  %s3 = inlined_call_operand.vmem [shape: f32[8,512], index: 3, kind: input, shape index: {}]
  %s4 = inlined_call_operand.vmem [shape: f32[1,512], index: 4, kind: input, shape index: {}]
  %s5 = inlined_call_operand.vmem [shape: f32[4,72], index: 5, kind: input, shape index: {}]
  %s6 = inlined_call_operand.vmem [shape: f32[4,1], index: 6, kind: input, shape index: {}]
  %s7 = inlined_call_operand.vmem [shape: f32[4,1], index: 7, kind: input, shape index: {}]
  %s8 = inlined_call_operand.vmem [shape: f32[4,512], index: 8, kind: output, shape index: {}]
  %s9 = sld [smem:[#allocation0]]
  $region42: #{upsample_block_forward.1} parent=0
    _
  %s11 = ssub.s32 1, %s9
  %s12 = scalar_select 0, %s11, %s9
  // Predicated region
  $region2: #{upsample_block_forward.1} parent=0 // pred_check
    _
  $region3: #{upsample_block_forward.1} parent=0 // pred_check_branch
    %14 = sbr.rel (0) target = $region5
  $region4: #{upsample_block_forward.1} parent=0 // pred_region
    _
  $region5: #{upsample_block_forward.1} parent=0 // pred_fallthru
    _
  // Predicated region
  $region6: #{upsample_block_forward.1} parent=0 // pred_check
    _
  $region7: #{upsample_block_forward.1} parent=0 // pred_check_branch
    %16 = sbr.rel (0) target = $region9
  $region8: #{upsample_block_forward.1} parent=0 // pred_region
    _
  $region9: #{upsample_block_forward.1} parent=0 // pred_fallthru
    _
  // Predicated region
  $region10: #{upsample_block_forward.1} parent=0 // pred_check
    _
  $region11: #{upsample_block_forward.1} parent=0 // pred_check_branch
    %18 = sbr.rel (0) target = $region13
  $region12: #{upsample_block_forward.1} parent=0 // pred_region
    _
  $region13: #{upsample_block_forward.1} parent=0 // pred_fallthru
    _
  // Predicated region
  $region14: #{upsample_block_forward.1} parent=0 // pred_check
    _
  $region15: #{upsample_block_forward.1} parent=0 // pred_check_branch
    %20 = sbr.rel (0) target = $region17
  $region16: #{upsample_block_forward.1} parent=0 // pred_region
    _
  $region17: #{upsample_block_forward.1} parent=0 // pred_fallthru
    _
  // Predicated region
  $region18: #{upsample_block_forward.1} parent=0 // pred_check
    _
  $region19: #{upsample_block_forward.1} parent=0 // pred_check_branch
    %22 = sbr.rel (0) target = $region21
  $region20: #{upsample_block_forward.1} parent=0 // pred_region
    _
  $region21: #{upsample_block_forward.1} parent=0 // pred_fallthru
    _
  // Predicated region
  $region22: #{upsample_block_forward.1} parent=0 // pred_check
    _
  $region23: #{upsample_block_forward.1} parent=0 // pred_check_branch
    %24 = sbr.rel (0) target = $region25
  $region24: #{upsample_block_forward.1} parent=0 // pred_region
    _
  $region25: #{upsample_block_forward.1} parent=0 // pred_fallthru
    _
  // Predicated region
  $region26: #{upsample_block_forward.1} parent=0 // pred_check
    _
  $region27: #{upsample_block_forward.1} parent=0 // pred_check_branch
    %26 = sbr.rel (0) target = $region29
  $region28: #{upsample_block_forward.1} parent=0 // pred_region
    _
  $region29: #{upsample_block_forward.1} parent=0 // pred_fallthru
    _
  // Predicated region
  $region30: #{upsample_block_forward.1} parent=0 // pred_check
    _
  $region31: #{upsample_block_forward.1} parent=0 // pred_check_branch
    %28 = sbr.rel (0) target = $region33
  $region32: #{upsample_block_forward.1} parent=0 // pred_region
    _
  $region33: #{upsample_block_forward.1} parent=0 // pred_fallthru
    _
  %v29 = vld [vmem:[%s4] sm:$0xf]
  %v30 = vld [vmem:[%s1] sm:$0xff]
  %v31 = vld [vmem:[%s0] sm:$0xff]
  %v32 = vld [vmem:[%s0 + $0x8] sm:$0xff]
  %v33 = vld [vmem:[%s0 + $0x10] sm:$0xff]
  %v34 = vld [vmem:[%s0 + $0x18] sm:$0xff]
  %v35 = vld [vmem:[%s0 + $0x20] sm:$0xff]
  %v36 = vld [vmem:[%s0 + $0x28] sm:$0xff]
  %v37 = vld [vmem:[%s0 + $0x30] sm:$0xff]
  %v38 = vld [vmem:[%s0 + $0x38] sm:$0xff]
  %v39 = vld [vmem:[%s0 + $0x40] sm:$0xff]
  %v40 = vld [vmem:[%s0 + $0x48] sm:$0xff]
  %v41 = vld [vmem:[%s0 + $0x50] sm:$0xff]
  %v42 = vld [vmem:[%s0 + $0x58] sm:$0xff]
  %v43 = vld [vmem:[%s0 + $0x60] sm:$0xff]
  %v44 = vld [vmem:[%s0 + $0x68] sm:$0xff]
  %v45 = vld [vmem:[%s0 + $0x70] sm:$0xff]
  %v46 = vld [vmem:[%s0 + $0x78] sm:$0xff]
  %v47 = vld [vmem:[%s0 + $0x80] sm:$0xff]
  %v48 = vld [vmem:[%s0 + $0x88] sm:$0xff]
  %v49 = vld [vmem:[%s0 + $0x90] sm:$0xff]
  %v50 = vld [vmem:[%s0 + $0x98] sm:$0xff]
  %v51 = vld [vmem:[%s0 + $0xa0] sm:$0xff]
  %v52 = vld [vmem:[%s0 + $0xa8] sm:$0xff]
  %v53 = vld [vmem:[%s0 + $0xb0] sm:$0xff]
  %v54 = vld [vmem:[%s0 + $0xb8] sm:$0xff]
  %v55 = vld [vmem:[%s0 + $0xc0] sm:$0xff]
  %v56 = vld [vmem:[%s0 + $0xc8] sm:$0xff]
  %v57 = vld [vmem:[%s0 + $0xd0] sm:$0xff]
  %v58 = vld [vmem:[%s0 + $0xd8] sm:$0xff]
  %v59 = vld [vmem:[%s0 + $0xe0] sm:$0xff]
  %v60 = vld [vmem:[%s0 + $0xe8] sm:$0xff]
  %v61 = vld [vmem:[%s0 + $0xf0] sm:$0xff]
  %v62 = vld [vmem:[%s0 + $0xf8] sm:$0xff]
  %v63 = vld [vmem:[%s2] sm:$0xff]
  %65 = vset.pattern.permute.xlu0 0
  %66 = vperm.xlu0 %65, %v63
  %v67 = vpop.permute.xlu0 %66
  %vm69 = vcmask 523264
  %v71 = vsel %vm69, %v30, 0
  %73 = vmatpush.msra.mxu0 0.0
  %74 = vmatpush.msra.mxu0 0.0
  %75 = vmatpush.msra.mxu0 0.0
  %76 = vmatpush.msra.mxu0 0.0
  %77 = vmatpush.msra.mxu0 0.0
  %78 = vmatpush.msra.mxu0 0.0
  %79 = vmatpush.msra.mxu0 0.0
  %80 = vmatpush.msra.mxu0 0.0
  %81 = vmatpush.msra.mxu0 %v59
  %82 = vmatpush.msra.mxu0 %v55
  %83 = vmatpush.msra.mxu0 %v51
  %84 = vmatpush.msra.mxu0 %v47
  %85 = vmatpush.msra.mxu0 %v43
  %86 = vmatpush.msra.mxu0 %v39
  %87 = vmatpush.msra.mxu0 %v35
  %88 = vmatpush.msra.mxu0 %v31
  %89 = vmatmul.f32.gmra.mxu0 %v71
  %v90 = vpop.f32.mrf.mxu0
  %v91 = vadd.f32 %v67, %v90
  %92 = vdwg.mxu0
  %93 = vmatpush.msra.mxu0 0.0
  %94 = vmatpush.msra.mxu0 0.0
  %95 = vmatpush.msra.mxu0 0.0
  %96 = vmatpush.msra.mxu0 0.0
  %97 = vmatpush.msra.mxu0 0.0
  %98 = vmatpush.msra.mxu0 0.0
  %99 = vmatpush.msra.mxu0 0.0
  %100 = vmatpush.msra.mxu0 0.0
  %101 = vmatpush.msra.mxu0 %v60
  %102 = vmatpush.msra.mxu0 %v56
  %103 = vmatpush.msra.mxu0 %v52
  %104 = vmatpush.msra.mxu0 %v48
  %105 = vmatpush.msra.mxu0 %v44
  %106 = vmatpush.msra.mxu0 %v40
  %107 = vmatpush.msra.mxu0 %v36
  %108 = vmatpush.msra.mxu0 %v32
  %109 = vmatmul.f32.gmra.mxu0 %v71
  %v110 = vpop.f32.mrf.mxu0
  %v111 = vadd.f32 %v67, %v110
  %112 = vdwg.mxu0
  %113 = vmatpush.msra.mxu0 0.0
  %114 = vmatpush.msra.mxu0 0.0
  %115 = vmatpush.msra.mxu0 0.0
  %116 = vmatpush.msra.mxu0 0.0
  %117 = vmatpush.msra.mxu0 0.0
  %118 = vmatpush.msra.mxu0 0.0
  %119 = vmatpush.msra.mxu0 0.0
  %120 = vmatpush.msra.mxu0 0.0
  %121 = vmatpush.msra.mxu0 %v61
  %122 = vmatpush.msra.mxu0 %v57
  %123 = vmatpush.msra.mxu0 %v53
  %124 = vmatpush.msra.mxu0 %v49
  %125 = vmatpush.msra.mxu0 %v45
  %126 = vmatpush.msra.mxu0 %v41
  %127 = vmatpush.msra.mxu0 %v37
  %128 = vmatpush.msra.mxu0 %v33
  %129 = vmatmul.f32.gmra.mxu0 %v71
  %v130 = vpop.f32.mrf.mxu0
  %v131 = vadd.f32 %v67, %v130
  %132 = vdwg.mxu0
  %133 = vmatpush.msra.mxu0 0.0
  %134 = vmatpush.msra.mxu0 0.0
  %135 = vmatpush.msra.mxu0 0.0
  %136 = vmatpush.msra.mxu0 0.0
  %137 = vmatpush.msra.mxu0 0.0
  %138 = vmatpush.msra.mxu0 0.0
  %139 = vmatpush.msra.mxu0 0.0
  %140 = vmatpush.msra.mxu0 0.0
  %141 = vmatpush.msra.mxu0 %v62
  %142 = vmatpush.msra.mxu0 %v58
  %143 = vmatpush.msra.mxu0 %v54
  %144 = vmatpush.msra.mxu0 %v50
  %145 = vmatpush.msra.mxu0 %v46
  %146 = vmatpush.msra.mxu0 %v42
  %147 = vmatpush.msra.mxu0 %v38
  %148 = vmatpush.msra.mxu0 %v34
  %149 = vmatmul.f32.gmra.mxu0 %v71
  %v150 = vpop.f32.mrf.mxu0
  %v151 = vadd.f32 %v67, %v150
  %152 = vdwg.mxu0
  %v154 = vperm.slane %v29, 0
  %v155 = vperm.slane %v29, 1
  %v156 = vperm.slane %v29, 2
  %v157 = vperm.slane %v29, 3
  %v162 = vmul.f32 %v91, %v154
  %v163 = vmul.f32 %v111, %v155
  %v164 = vmul.f32 %v131, %v156
  %v165 = vmul.f32 %v151, %v157
  %v166 = vld [vmem:[%s3] sm:$0xff]
  %v167 = vld [vmem:[%s3 + $0x8] sm:$0xff]
  %v168 = vld [vmem:[%s3 + $0x10] sm:$0xff]
  %v169 = vld [vmem:[%s3 + $0x18] sm:$0xff]
  %v170 = vadd.f32 %v162, %v166
  %v171 = vadd.f32 %v163, %v167
  %v172 = vadd.f32 %v164, %v168
  %v173 = vadd.f32 %v165, %v169
  %174 = vst [vmem:[#allocation2] sm:$0xff] 0.0
  %175 = vst [vmem:[#allocation2 + $0x8] sm:$0xff] 0.0
  %176 = vst [vmem:[#allocation2 + $0x10] sm:$0xff] 0.0
  %177 = vst [vmem:[#allocation2 + $0x18] sm:$0xff] 0.0
  %178 = vst [vmem:[#allocation2 + $0x20] sm:$0xff] 0.0
  %179 = vst [vmem:[#allocation2 + $0x28] sm:$0xff] 0.0
  %180 = vst [vmem:[#allocation2 + $0x8] sm:$0xff] %v170
  %181 = vst [vmem:[#allocation2 + $0x10] sm:$0xff] %v171
  %182 = vst [vmem:[#allocation2 + $0x18] sm:$0xff] %v172
  %183 = vst [vmem:[#allocation2 + $0x20] sm:$0xff] %v173
  %v184 = vld [vmem:[#allocation2] sm:$0xff]
  %v185 = vld [vmem:[#allocation2 + $0x8] sm:$0xff]
  %v186 = vld [vmem:[#allocation2 + $0x10] sm:$0xff]
  %v187 = vld [vmem:[#allocation2 + $0x18] sm:$0xff]
  %v188 = vld [vmem:[#allocation2 + $0x20] sm:$0xff]
  %194 = vrot.lane.b32.xlu0 %v184, 17
  %v195 = vpop.permute.xlu0 %194
  %196 = vrot.lane.b32.xlu0 %v185, 17
  %v197 = vpop.permute.xlu0 %196
  %198 = vrot.lane.b32.xlu0 %v186, 17
  %v199 = vpop.permute.xlu0 %198
  %200 = vrot.lane.b32.xlu0 %v187, 17
  %v201 = vpop.permute.xlu0 %200
  %202 = vrot.lane.b32.xlu0 %v188, 17
  %v203 = vpop.permute.xlu0 %202
  %vm204 = vcmask 138240
  %v205 = vsel %vm204, %v195, %v197
  %v206 = vsel %vm204, %v197, %v199
  %v207 = vsel %vm204, %v199, %v201
  %v208 = vsel %vm204, %v201, %v203
  %213 = vst [vmem:[#allocation3] sm:$0xff] %v205
  %214 = vst [vmem:[#allocation3 + $0x8] sm:$0xff] %v206
  %215 = vst [vmem:[#allocation3 + $0x10] sm:$0xff] %v207
  %216 = vst [vmem:[#allocation3 + $0x18] sm:$0xff] %v208
  %v217 = vld [vmem:[#allocation2] sm:$0xff]
  %v218 = vld [vmem:[#allocation2 + $0x8] sm:$0xff]
  %v219 = vld [vmem:[#allocation2 + $0x10] sm:$0xff]
  %v220 = vld [vmem:[#allocation2 + $0x18] sm:$0xff]
  %v221 = vld [vmem:[#allocation2 + $0x20] sm:$0xff]
  %227 = vrot.lane.b32.xlu0 %v217, 16
  %v228 = vpop.permute.xlu0 %227
  %229 = vrot.lane.b32.xlu0 %v218, 16
  %v230 = vpop.permute.xlu0 %229
  %231 = vrot.lane.b32.xlu0 %v219, 16
  %v232 = vpop.permute.xlu0 %231
  %233 = vrot.lane.b32.xlu0 %v220, 16
  %v234 = vpop.permute.xlu0 %233
  %235 = vrot.lane.b32.xlu0 %v221, 16
  %v236 = vpop.permute.xlu0 %235
  %vm237 = vcmask 130048
  %v238 = vsel %vm237, %v228, %v230
  %v239 = vsel %vm237, %v230, %v232
  %v240 = vsel %vm237, %v232, %v234
  %v241 = vsel %vm237, %v234, %v236
  %246 = vst [vmem:[#allocation3 + $0x20] sm:$0xff] %v238
  %247 = vst [vmem:[#allocation3 + $0x28] sm:$0xff] %v239
  %248 = vst [vmem:[#allocation3 + $0x30] sm:$0xff] %v240
  %249 = vst [vmem:[#allocation3 + $0x38] sm:$0xff] %v241
  %v250 = vld [vmem:[#allocation2] sm:$0xff]
  %v251 = vld [vmem:[#allocation2 + $0x8] sm:$0xff]
  %v252 = vld [vmem:[#allocation2 + $0x10] sm:$0xff]
  %v253 = vld [vmem:[#allocation2 + $0x18] sm:$0xff]
  %v254 = vld [vmem:[#allocation2 + $0x20] sm:$0xff]
  %260 = vrot.lane.b32.xlu0 %v250, 15
  %v261 = vpop.permute.xlu0 %260
  %262 = vrot.lane.b32.xlu0 %v251, 15
  %v263 = vpop.permute.xlu0 %262
  %264 = vrot.lane.b32.xlu0 %v252, 15
  %v265 = vpop.permute.xlu0 %264
  %266 = vrot.lane.b32.xlu0 %v253, 15
  %v267 = vpop.permute.xlu0 %266
  %268 = vrot.lane.b32.xlu0 %v254, 15
  %v269 = vpop.permute.xlu0 %268
  %vm270 = vcmask 121856
  %v271 = vsel %vm270, %v261, %v263
  %v272 = vsel %vm270, %v263, %v265
  %v273 = vsel %vm270, %v265, %v267
  %v274 = vsel %vm270, %v267, %v269
  %279 = vst [vmem:[#allocation3 + $0x40] sm:$0xff] %v271
  %280 = vst [vmem:[#allocation3 + $0x48] sm:$0xff] %v272
  %281 = vst [vmem:[#allocation3 + $0x50] sm:$0xff] %v273
  %282 = vst [vmem:[#allocation3 + $0x58] sm:$0xff] %v274
  %v283 = vld [vmem:[#allocation2] sm:$0xff]
  %v284 = vld [vmem:[#allocation2 + $0x8] sm:$0xff]
  %v285 = vld [vmem:[#allocation2 + $0x10] sm:$0xff]
  %v286 = vld [vmem:[#allocation2 + $0x18] sm:$0xff]
  %v287 = vld [vmem:[#allocation2 + $0x20] sm:$0xff]
  %293 = vrot.lane.b32.xlu0 %v283, 1
  %v294 = vpop.permute.xlu0 %293
  %295 = vrot.lane.b32.xlu0 %v284, 1
  %v296 = vpop.permute.xlu0 %295
  %297 = vrot.lane.b32.xlu0 %v285, 1
  %v298 = vpop.permute.xlu0 %297
  %299 = vrot.lane.b32.xlu0 %v286, 1
  %v300 = vpop.permute.xlu0 %299
  %301 = vrot.lane.b32.xlu0 %v287, 1
  %v302 = vpop.permute.xlu0 %301
  %vm303 = vcmask 7168
  %v304 = vsel %vm303, %v294, %v296
  %v305 = vsel %vm303, %v296, %v298
  %v306 = vsel %vm303, %v298, %v300
  %v307 = vsel %vm303, %v300, %v302
  %312 = vst [vmem:[#allocation3 + $0x60] sm:$0xff] %v304
  %313 = vst [vmem:[#allocation3 + $0x68] sm:$0xff] %v305
  %314 = vst [vmem:[#allocation3 + $0x70] sm:$0xff] %v306
  %315 = vst [vmem:[#allocation3 + $0x78] sm:$0xff] %v307
  %v316 = vld [vmem:[#allocation2 + $0x8] sm:$0xff]
  %v317 = vld [vmem:[#allocation2 + $0x10] sm:$0xff]
  %v318 = vld [vmem:[#allocation2 + $0x18] sm:$0xff]
  %v319 = vld [vmem:[#allocation2 + $0x20] sm:$0xff]
  %320 = vst [vmem:[#allocation3 + $0x80] sm:$0xff] %v316
  %321 = vst [vmem:[#allocation3 + $0x88] sm:$0xff] %v317
  %322 = vst [vmem:[#allocation3 + $0x90] sm:$0xff] %v318
  %323 = vst [vmem:[#allocation3 + $0x98] sm:$0xff] %v319
  %v324 = vld [vmem:[#allocation2 + $0x8] sm:$0xff]
  %v325 = vld [vmem:[#allocation2 + $0x10] sm:$0xff]
  %v326 = vld [vmem:[#allocation2 + $0x18] sm:$0xff]
  %v327 = vld [vmem:[#allocation2 + $0x20] sm:$0xff]
  %v328 = vld [vmem:[#allocation2 + $0x28] sm:$0xff]
  %334 = vrot.lane.b32.xlu0 %v324, 127
  %v335 = vpop.permute.xlu0 %334
  %336 = vrot.lane.b32.xlu0 %v325, 127
  %v337 = vpop.permute.xlu0 %336
  %338 = vrot.lane.b32.xlu0 %v326, 127
  %v339 = vpop.permute.xlu0 %338
  %340 = vrot.lane.b32.xlu0 %v327, 127
  %v341 = vpop.permute.xlu0 %340
  %342 = vrot.lane.b32.xlu0 %v328, 127
  %v343 = vpop.permute.xlu0 %342
  %vm344 = vcmask 1039360
  %v345 = vsel %vm344, %v335, %v337
  %v346 = vsel %vm344, %v337, %v339
  %v347 = vsel %vm344, %v339, %v341
  %v348 = vsel %vm344, %v341, %v343
  %353 = vst [vmem:[#allocation3 + $0xa0] sm:$0xff] %v345
  %354 = vst [vmem:[#allocation3 + $0xa8] sm:$0xff] %v346
  %355 = vst [vmem:[#allocation3 + $0xb0] sm:$0xff] %v347
  %356 = vst [vmem:[#allocation3 + $0xb8] sm:$0xff] %v348
  %v357 = vld [vmem:[#allocation2 + $0x8] sm:$0xff]
  %v358 = vld [vmem:[#allocation2 + $0x10] sm:$0xff]
  %v359 = vld [vmem:[#allocation2 + $0x18] sm:$0xff]
  %v360 = vld [vmem:[#allocation2 + $0x20] sm:$0xff]
  %v361 = vld [vmem:[#allocation2 + $0x28] sm:$0xff]
  %367 = vrot.lane.b32.xlu0 %v357, 113
  %v368 = vpop.permute.xlu0 %367
  %369 = vrot.lane.b32.xlu0 %v358, 113
  %v370 = vpop.permute.xlu0 %369
  %371 = vrot.lane.b32.xlu0 %v359, 113
  %v372 = vpop.permute.xlu0 %371
  %373 = vrot.lane.b32.xlu0 %v360, 113
  %v374 = vpop.permute.xlu0 %373
  %375 = vrot.lane.b32.xlu0 %v361, 113
  %v376 = vpop.permute.xlu0 %375
  %vm377 = vcmask 924672
  %v378 = vsel %vm377, %v368, %v370
  %v379 = vsel %vm377, %v370, %v372
  %v380 = vsel %vm377, %v372, %v374
  %v381 = vsel %vm377, %v374, %v376
  %386 = vst [vmem:[#allocation3 + $0xc0] sm:$0xff] %v378
  %387 = vst [vmem:[#allocation3 + $0xc8] sm:$0xff] %v379
  %388 = vst [vmem:[#allocation3 + $0xd0] sm:$0xff] %v380
  %389 = vst [vmem:[#allocation3 + $0xd8] sm:$0xff] %v381
  %v390 = vld [vmem:[#allocation2 + $0x8] sm:$0xff]
  %v391 = vld [vmem:[#allocation2 + $0x10] sm:$0xff]
  %v392 = vld [vmem:[#allocation2 + $0x18] sm:$0xff]
  %v393 = vld [vmem:[#allocation2 + $0x20] sm:$0xff]
  %v394 = vld [vmem:[#allocation2 + $0x28] sm:$0xff]
  %400 = vrot.lane.b32.xlu0 %v390, 112
  %v401 = vpop.permute.xlu0 %400
  %402 = vrot.lane.b32.xlu0 %v391, 112
  %v403 = vpop.permute.xlu0 %402
  %404 = vrot.lane.b32.xlu0 %v392, 112
  %v405 = vpop.permute.xlu0 %404
  %406 = vrot.lane.b32.xlu0 %v393, 112
  %v407 = vpop.permute.xlu0 %406
  %408 = vrot.lane.b32.xlu0 %v394, 112
  %v409 = vpop.permute.xlu0 %408
  %vm410 = vcmask 916480
  %v411 = vsel %vm410, %v401, %v403
  %v412 = vsel %vm410, %v403, %v405
  %v413 = vsel %vm410, %v405, %v407
  %v414 = vsel %vm410, %v407, %v409
  %419 = vst [vmem:[#allocation3 + $0xe0] sm:$0xff] %v411
  %420 = vst [vmem:[#allocation3 + $0xe8] sm:$0xff] %v412
  %421 = vst [vmem:[#allocation3 + $0xf0] sm:$0xff] %v413
  %422 = vst [vmem:[#allocation3 + $0xf8] sm:$0xff] %v414
  %v423 = vld [vmem:[#allocation2 + $0x8] sm:$0xff]
  %v424 = vld [vmem:[#allocation2 + $0x10] sm:$0xff]
  %v425 = vld [vmem:[#allocation2 + $0x18] sm:$0xff]
  %v426 = vld [vmem:[#allocation2 + $0x20] sm:$0xff]
  %v427 = vld [vmem:[#allocation2 + $0x28] sm:$0xff]
  %433 = vrot.lane.b32.xlu0 %v423, 111
  %v434 = vpop.permute.xlu0 %433
  %435 = vrot.lane.b32.xlu0 %v424, 111
  %v436 = vpop.permute.xlu0 %435
  %437 = vrot.lane.b32.xlu0 %v425, 111
  %v438 = vpop.permute.xlu0 %437
  %439 = vrot.lane.b32.xlu0 %v426, 111
  %v440 = vpop.permute.xlu0 %439
  %441 = vrot.lane.b32.xlu0 %v427, 111
  %v442 = vpop.permute.xlu0 %441
  %vm443 = vcmask 908288
  %v444 = vsel %vm443, %v434, %v436
  %v445 = vsel %vm443, %v436, %v438
  %v446 = vsel %vm443, %v438, %v440
  %v447 = vsel %vm443, %v440, %v442
  %452 = vst [vmem:[#allocation3 + $0x100] sm:$0xff] %v444
  %453 = vst [vmem:[#allocation3 + $0x108] sm:$0xff] %v445
  %454 = vst [vmem:[#allocation3 + $0x110] sm:$0xff] %v446
  %455 = vst [vmem:[#allocation3 + $0x118] sm:$0xff] %v447
  %v456 = vld [vmem:[%s5] sm:$0xf]
  %v457 = vld [vmem:[#allocation3] sm:$0xff]
  %v458 = vld [vmem:[#allocation3 + $0x8] sm:$0xff]
  %v459 = vld [vmem:[#allocation3 + $0x10] sm:$0xff]
  %v460 = vld [vmem:[#allocation3 + $0x18] sm:$0xff]
  %v461 = vld [vmem:[#allocation3 + $0x20] sm:$0xff]
  %v462 = vld [vmem:[#allocation3 + $0x28] sm:$0xff]
  %v463 = vld [vmem:[#allocation3 + $0x30] sm:$0xff]
  %v464 = vld [vmem:[#allocation3 + $0x38] sm:$0xff]
  %v465 = vld [vmem:[#allocation3 + $0x40] sm:$0xff]
  %v466 = vld [vmem:[#allocation3 + $0x48] sm:$0xff]
  %v467 = vld [vmem:[#allocation3 + $0x50] sm:$0xff]
  %v468 = vld [vmem:[#allocation3 + $0x58] sm:$0xff]
  %v469 = vld [vmem:[#allocation3 + $0x60] sm:$0xff]
  %v470 = vld [vmem:[#allocation3 + $0x68] sm:$0xff]
  %v471 = vld [vmem:[#allocation3 + $0x70] sm:$0xff]
  %v472 = vld [vmem:[#allocation3 + $0x78] sm:$0xff]
  %v473 = vld [vmem:[#allocation3 + $0x80] sm:$0xff]
  %v474 = vld [vmem:[#allocation3 + $0x88] sm:$0xff]
  %v475 = vld [vmem:[#allocation3 + $0x90] sm:$0xff]
  %v476 = vld [vmem:[#allocation3 + $0x98] sm:$0xff]
  %v477 = vld [vmem:[#allocation3 + $0xa0] sm:$0xff]
  %v478 = vld [vmem:[#allocation3 + $0xa8] sm:$0xff]
  %v479 = vld [vmem:[#allocation3 + $0xb0] sm:$0xff]
  %v480 = vld [vmem:[#allocation3 + $0xb8] sm:$0xff]
  %v481 = vld [vmem:[#allocation3 + $0xc0] sm:$0xff]
  %v482 = vld [vmem:[#allocation3 + $0xc8] sm:$0xff]
  %v483 = vld [vmem:[#allocation3 + $0xd0] sm:$0xff]
  %v484 = vld [vmem:[#allocation3 + $0xd8] sm:$0xff]
  %v485 = vld [vmem:[#allocation3 + $0xe0] sm:$0xff]
  %v486 = vld [vmem:[#allocation3 + $0xe8] sm:$0xff]
  %v487 = vld [vmem:[#allocation3 + $0xf0] sm:$0xff]
  %v488 = vld [vmem:[#allocation3 + $0xf8] sm:$0xff]
  %v489 = vld [vmem:[#allocation3 + $0x100] sm:$0xff]
  %v490 = vld [vmem:[#allocation3 + $0x108] sm:$0xff]
  %v491 = vld [vmem:[#allocation3 + $0x110] sm:$0xff]
  %v492 = vld [vmem:[#allocation3 + $0x118] sm:$0xff]
  %vm493 = vcmask 588800
  %v495 = vsel %vm493, %v456, 0
  %497 = vmatpush.msra.mxu0 0.0
  %498 = vmatpush.msra.mxu0 0.0
  %499 = vmatpush.msra.mxu0 0.0
  %500 = vmatpush.msra.mxu0 0.0
  %501 = vmatpush.msra.mxu0 0.0
  %502 = vmatpush.msra.mxu0 0.0
  %503 = vmatpush.msra.mxu0 0.0
  %504 = vmatpush.msra.mxu0 %v489
  %505 = vmatpush.msra.mxu0 %v485
  %506 = vmatpush.msra.mxu0 %v481
  %507 = vmatpush.msra.mxu0 %v477
  %508 = vmatpush.msra.mxu0 %v473
  %509 = vmatpush.msra.mxu0 %v469
  %510 = vmatpush.msra.mxu0 %v465
  %511 = vmatpush.msra.mxu0 %v461
  %512 = vmatpush.msra.mxu0 %v457
  %513 = vmatmul.f32.gmra.mxu0 %v495
  %v514 = vpop.f32.mrf.mxu0
  %v515 = vadd.f32 0.0, %v514
  %516 = vdwg.mxu0
  %517 = vmatpush.msra.mxu0 0.0
  %518 = vmatpush.msra.mxu0 0.0
  %519 = vmatpush.msra.mxu0 0.0
  %520 = vmatpush.msra.mxu0 0.0
  %521 = vmatpush.msra.mxu0 0.0
  %522 = vmatpush.msra.mxu0 0.0
  %523 = vmatpush.msra.mxu0 0.0
  %524 = vmatpush.msra.mxu0 %v490
  %525 = vmatpush.msra.mxu0 %v486
  %526 = vmatpush.msra.mxu0 %v482
  %527 = vmatpush.msra.mxu0 %v478
  %528 = vmatpush.msra.mxu0 %v474
  %529 = vmatpush.msra.mxu0 %v470
  %530 = vmatpush.msra.mxu0 %v466
  %531 = vmatpush.msra.mxu0 %v462
  %532 = vmatpush.msra.mxu0 %v458
  %533 = vmatmul.f32.gmra.mxu0 %v495
  %v534 = vpop.f32.mrf.mxu0
  %v535 = vadd.f32 0.0, %v534
  %536 = vdwg.mxu0
  %537 = vmatpush.msra.mxu0 0.0
  %538 = vmatpush.msra.mxu0 0.0
  %539 = vmatpush.msra.mxu0 0.0
  %540 = vmatpush.msra.mxu0 0.0
  %541 = vmatpush.msra.mxu0 0.0
  %542 = vmatpush.msra.mxu0 0.0
  %543 = vmatpush.msra.mxu0 0.0
  %544 = vmatpush.msra.mxu0 %v491
  %545 = vmatpush.msra.mxu0 %v487
  %546 = vmatpush.msra.mxu0 %v483
  %547 = vmatpush.msra.mxu0 %v479
  %548 = vmatpush.msra.mxu0 %v475
  %549 = vmatpush.msra.mxu0 %v471
  %550 = vmatpush.msra.mxu0 %v467
  %551 = vmatpush.msra.mxu0 %v463
  %552 = vmatpush.msra.mxu0 %v459
  %553 = vmatmul.f32.gmra.mxu0 %v495
  %v554 = vpop.f32.mrf.mxu0
  %v555 = vadd.f32 0.0, %v554
  %556 = vdwg.mxu0
  %557 = vmatpush.msra.mxu0 0.0
  %558 = vmatpush.msra.mxu0 0.0
  %559 = vmatpush.msra.mxu0 0.0
  %560 = vmatpush.msra.mxu0 0.0
  %561 = vmatpush.msra.mxu0 0.0
  %562 = vmatpush.msra.mxu0 0.0
  %563 = vmatpush.msra.mxu0 0.0
  %564 = vmatpush.msra.mxu0 %v492
  %565 = vmatpush.msra.mxu0 %v488
  %566 = vmatpush.msra.mxu0 %v484
  %567 = vmatpush.msra.mxu0 %v480
  %568 = vmatpush.msra.mxu0 %v476
  %569 = vmatpush.msra.mxu0 %v472
  %570 = vmatpush.msra.mxu0 %v468
  %571 = vmatpush.msra.mxu0 %v464
  %572 = vmatpush.msra.mxu0 %v460
  %573 = vmatmul.f32.gmra.mxu0 %v495
  %v574 = vpop.f32.mrf.mxu0
  %v575 = vadd.f32 0.0, %v574
  %576 = vdwg.mxu0
  %v577 = vmul.f32 %v515, %v154
  %v578 = vmul.f32 %v535, %v155
  %v579 = vmul.f32 %v555, %v156
  %v580 = vmul.f32 %v575, %v157
  %vm581 = vcmask 1043456
  %v582 = vsel %vm581, %v577, 0.0
  %v583 = vsel %vm581, %v578, 0.0
  %v584 = vadd.f32 %v582, %v583
  %v585 = vsel %vm581, %v579, 0.0
  %v586 = vadd.f32 %v584, %v585
  %v587 = vsel %vm581, %v580, 0.0
  %v588 = vadd.f32 %v586, %v587
  %589 = vadd.xlane.f32.xlu0 %v588
  %v590 = vpop.xlane.xlu0 %589
  %v591 = vmul.f32 %v590, 0.0022222223
  %v592 = vmul.f32 %v577, %v577
  %v593 = vmul.f32 %v578, %v578
  %v594 = vmul.f32 %v579, %v579
  %v595 = vmul.f32 %v580, %v580
  %v596 = vsel %vm581, %v592, 0.0
  %v597 = vsel %vm581, %v593, 0.0
  %v598 = vadd.f32 %v596, %v597
  %v599 = vsel %vm581, %v594, 0.0
  %v600 = vadd.f32 %v598, %v599
  %v601 = vsel %vm581, %v595, 0.0
  %v602 = vadd.f32 %v600, %v601
  %603 = vadd.xlane.f32.xlu0 %v602
  %v604 = vpop.xlane.xlu0 %603
  %v605 = vmul.f32 %v604, 0.0022222223
  %v606 = vmul.f32 %v591, %v591
  %v607 = vsub.f32 %v605, %v606
  %v608 = vsub.f32 %v577, %v591
  %v609 = vsub.f32 %v578, %v591
  %v610 = vsub.f32 %v579, %v591
  %v611 = vsub.f32 %v580, %v591
  %v612 = vadd.f32 %v607, 1e-05
  %v613 = vrsqrt.pop %v612
  %v614 = vmul.f32 %v613, %v612
  %v615 = vmul.f32 %v614, %v613
  %v616 = vmul.f32 0.5, %v615
  %v617 = vsub.f32 1.5, %v616
  %v618 = vmul.f32 %v613, %v617
  %vm619 = vweird.f32 %v612
  %vm620 = vweird.f32 %v613
  %vm621 = vmor %vm619, %vm620
  %v622 = vsel %vm621, %v613, %v618
  %v623 = vmul.f32 %v608, %v622
  %v624 = vmul.f32 %v609, %v622
  %v625 = vmul.f32 %v610, %v622
  %v626 = vmul.f32 %v611, %v622
  %v627 = vld [vmem:[%s6] sm:$0xf]
  %629 = vset.pattern.permute.xlu0 0
  %630 = vperm.xlu0 %629, %v627
  %v631 = vpop.permute.xlu0 %630
  %v633 = vmul.f32 %v623, %v631
  %v634 = vmul.f32 %v624, %v631
  %v635 = vmul.f32 %v625, %v631
  %v636 = vmul.f32 %v626, %v631
  %v637 = vld [vmem:[%s7] sm:$0xf]
  %639 = vset.pattern.permute.xlu0 0
  %640 = vperm.xlu0 %639, %v637
  %v641 = vpop.permute.xlu0 %640
  %v643 = vadd.f32 %v633, %v641
  %v644 = vadd.f32 %v634, %v641
  %v645 = vadd.f32 %v635, %v641
  %v646 = vadd.f32 %v636, %v641
  %v647 = vmax.f32 %v643, 0.0
  %v648 = vmax.f32 %v644, 0.0
  %v649 = vmax.f32 %v645, 0.0
  %v650 = vmax.f32 %v646, 0.0
  %v655 = vrot.slane %v648, 4
  %v656 = vrot.slane %v650, 4
  %v657 = vsel %vm581, %v647, %v655
  %v658 = vsel %vm581, %v649, %v656
  %661 = vst [vmem:[%s8] sm:$0xff] %v657
  %662 = vst [vmem:[%s8 + $0x8] sm:$0xff] %v658
  // Predicated region
  $region34: #{upsample_block_forward.1} parent=0 // pred_check
    _
  $region35: #{upsample_block_forward.1} parent=0 // pred_check_branch
    %664 = sbr.rel (0) target = $region37
  $region36: #{upsample_block_forward.1} parent=0 // pred_region
    _
  $region37: #{upsample_block_forward.1} parent=0 // pred_fallthru
    _
  // Predicated region
  $region38: #{upsample_block_forward.1} parent=0 // pred_check
    _
  $region39: #{upsample_block_forward.1} parent=0 // pred_check_branch
    %666 = sbr.rel (0) target = $region41
  $region40: #{upsample_block_forward.1} parent=0 // pred_region
    _
  $region41: #{upsample_block_forward.1} parent=0 // pred_fallthru
    _

</llo_original>
